<compile_context>
chip_gen: v7x
topology: tpu7x:2x2x1
jax: 0.10.0
libtpu: 0.0.40
codegen_flags: <defaults>
</compile_context>

<pallas_src>
import jax
import jax.numpy as jnp
from jax.experimental import pallas as pl
from jax.experimental.pallas import tpu as pltpu


def _meta_learner_kernel(xi_ref, xu_ref, w1i_ref, w1u_ref, b1_ref,
                         w2_ref, b2_ref, w3t_ref, b3_ref, out_ref):
    # xi_ref  : [TN, Di]  item_emb row tile
    # xu_ref  : [TN, Du]  user_neigh_emb row tile
    # w1i_ref : [Di, H1]  (w1.T rows matching item_emb columns)
    # w1u_ref : [Du, H1]  (w1.T rows matching user_neigh_emb columns)
    # b1_ref  : [1, H1]
    # w2_ref  : [H1, H2]  (w2.T)
    # b2_ref  : [1, H2]
    # w3t_ref : [H2, 1]   (w3.T)
    # b3_ref  : [1, 1]
    # out_ref : [TN, 1]

    # fc1 + ReLU  (concat folded into two matmuls against the split w1)
    h = jnp.dot(xi_ref[...], w1i_ref[...], preferred_element_type=jnp.float32)
    h = h + jnp.dot(xu_ref[...], w1u_ref[...], preferred_element_type=jnp.float32)
    h = jnp.maximum(h + b1_ref[...], 0.0)

    # fc2 + ReLU
    h = jnp.dot(h, w2_ref[...], preferred_element_type=jnp.float32)
    h = jnp.maximum(h + b2_ref[...], 0.0)

    # fc3 (scalar head)
    y = jnp.dot(h, w3t_ref[...], preferred_element_type=jnp.float32) + b3_ref[...]
    out_ref[...] = y.astype(out_ref.dtype)


def meta_learner_forward(user_emb, item_emb, user_neigh_emb, params, *, row_tile=512):
    """Pallas equivalent of MetaLearner.forward(user_emb, item_emb, user_neigh_emb).

    `params` maps the torch parameter names ('ml_fc_w1', 'ml_fc_b1', ...) to arrays
    (this also covers the optional `vars_dict` override in the torch forward).
    Returns a [N] float32 vector (torch returns x.squeeze()).
    """
    del user_emb  # unused by the torch forward; never DMA'd into the kernel.

    n, di = item_emb.shape
    _, du = user_neigh_emb.shape

    w1 = params["ml_fc_w1"].astype(jnp.float32)   # [H1, Di + Du]
    b1 = params["ml_fc_b1"].astype(jnp.float32)   # [H1]
    w2 = params["ml_fc_w2"].astype(jnp.float32)   # [H2, H1]
    b2 = params["ml_fc_b2"].astype(jnp.float32)   # [H2]  (torch declares fc2_in_dim;
                                                  #        only valid when it == fc2_out_dim)
    w3 = params["ml_fc_w3"].astype(jnp.float32)   # [1, H2]
    b3 = params["ml_fc_b3"].astype(jnp.float32)   # [1]

    h1 = w1.shape[0]
    h2 = w2.shape[0]
    assert w1.shape[1] == di + du, "w1 input dim must equal item_dim + neigh_dim"
    assert b2.shape[0] == h2, "b2 must match fc2 output dim (torch requires fc2_in==fc2_out)"
    assert w3.shape == (1, h2)

    # One-time wrapper-side prep (outside the hot loop): transpose weights so the
    # kernel does plain x @ Wt, split w1 to avoid an in-kernel concat, and shape
    # biases as [1, H] rows.
    w1t = w1.T                      # [Di+Du, H1]
    w1t_i = w1t[:di, :]             # [Di, H1]
    w1t_u = w1t[di:, :]             # [Du, H1]
    w2t = w2.T                      # [H1, H2]
    w3t = w3.T                      # [H2, 1]
    b1r = b1.reshape(1, h1)
    b2r = b2.reshape(1, h2)
    b3r = b3.reshape(1, 1)

    # Row tiling over N; pad N up to a tile multiple so every block is legal.
    assert row_tile % 128 == 0
    tn = n if n <= row_tile else row_tile
    n_pad = -(-n // tn) * tn

    xi = item_emb.astype(jnp.float32)
    xu = user_neigh_emb.astype(jnp.float32)
    if n_pad != n:
        pad = n_pad - n
        xi = jnp.pad(xi, ((0, pad), (0, 0)))
        xu = jnp.pad(xu, ((0, pad), (0, 0)))

    grid = (n_pad // tn,)

    out = pl.pallas_call(
        _meta_learner_kernel,
        out_shape=jax.ShapeDtypeStruct((n_pad, 1), jnp.float32),
        grid=grid,
        in_specs=[
            pl.BlockSpec((tn, di), lambda i: (i, 0)),    # item_emb row tile
            pl.BlockSpec((tn, du), lambda i: (i, 0)),    # user_neigh_emb row tile
            pl.BlockSpec((di, h1), lambda i: (0, 0)),    # w1.T (item part), resident
            pl.BlockSpec((du, h1), lambda i: (0, 0)),    # w1.T (neigh part), resident
            pl.BlockSpec((1, h1), lambda i: (0, 0)),     # b1
            pl.BlockSpec((h1, h2), lambda i: (0, 0)),    # w2.T, resident
            pl.BlockSpec((1, h2), lambda i: (0, 0)),     # b2
            pl.BlockSpec((h2, 1), lambda i: (0, 0)),     # w3.T
            pl.BlockSpec((1, 1), lambda i: (0, 0)),      # b3
        ],
        out_specs=pl.BlockSpec((tn, 1), lambda i: (i, 0)),
        compiler_params=pltpu.CompilerParams(
            dimension_semantics=("parallel",),           # shards across TCs on v7x
        ),
    )(xi, xu, w1t_i, w1t_u, b1r, w2t, b2r, w3t, b3r)

    # TODO(synk): torch's x.squeeze() returns a 0-d scalar when N == 1; we always
    # return shape [N].
    return out.reshape(n_pad)[:n]


if __name__ == "__main__":
    # Small config consistent with MetaHIN defaults.
    embedding_dim = 32                 # width of user_neigh_emb (the "32" in fc1_in_dim)
    item_embedding_dim = 32            # config.item_embedding_dim
    fc1_in_dim = 32 + item_embedding_dim      # 64
    first_fc_hidden_dim = 64           # fc2_in_dim
    second_fc_hidden_dim = 64          # fc2_out_dim (== fc2_in_dim so torch's b2 shape works)
    n = 16                             # #samples in a task

    key = jax.random.PRNGKey(0)
    ks = jax.random.split(key, 9)

    def xavier_normal(k, shape):
        fan_out, fan_in = shape
        std = (2.0 / (fan_in + fan_out)) ** 0.5
        return std * jax.random.normal(k, shape, dtype=jnp.float32)

    # (torch inits biases to zero; we use small nonzero biases to exercise the bias path)
    params = {
        "ml_fc_w1": xavier_normal(ks[0], (first_fc_hidden_dim, fc1_in_dim)),
        "ml_fc_b1": 0.1 * jax.random.normal(ks[1], (first_fc_hidden_dim,), dtype=jnp.float32),
        "ml_fc_w2": xavier_normal(ks[2], (second_fc_hidden_dim, first_fc_hidden_dim)),
        "ml_fc_b2": 0.1 * jax.random.normal(ks[3], (second_fc_hidden_dim,), dtype=jnp.float32),
        "ml_fc_w3": xavier_normal(ks[4], (1, second_fc_hidden_dim)),
        "ml_fc_b3": 0.1 * jax.random.normal(ks[5], (1,), dtype=jnp.float32),
    }

    user_emb = jax.random.normal(ks[6], (n, embedding_dim), dtype=jnp.float32)  # unused by forward
    item_emb = jax.random.normal(ks[7], (n, item_embedding_dim), dtype=jnp.float32)
    user_neigh_emb = jax.random.normal(ks[8], (n, embedding_dim), dtype=jnp.float32)

    out = meta_learner_forward(user_emb, item_emb, user_neigh_emb, params)
    out = jax.block_until_ready(out)

    # Plain-JAX reference of the torch forward.
    x = jnp.concatenate([item_emb, user_neigh_emb], axis=1)
    x = jax.nn.relu(x @ params["ml_fc_w1"].T + params["ml_fc_b1"])
    x = jax.nn.relu(x @ params["ml_fc_w2"].T + params["ml_fc_b2"])
    ref = (x @ params["ml_fc_w3"].T + params["ml_fc_b3"]).squeeze()

    assert out.shape == (n,)
    assert jnp.allclose(out, ref, atol=1e-4, rtol=1e-4), "mismatch vs reference MLP"
    print("KERNEL_OK")
</pallas_src>

<mosaic_0001>
module attributes {stable_mosaic.version = 11 : i64} {
  func.func @_meta_learner_kernel(%arg0: i32, %arg1: memref<16x32xf32, #tpu.memory_space<vmem>>, %arg2: memref<16x32xf32, #tpu.memory_space<vmem>>, %arg3: memref<32x64xf32, #tpu.memory_space<vmem>>, %arg4: memref<32x64xf32, #tpu.memory_space<vmem>>, %arg5: memref<1x64xf32, #tpu.memory_space<vmem>>, %arg6: memref<64x64xf32, #tpu.memory_space<vmem>>, %arg7: memref<1x64xf32, #tpu.memory_space<vmem>>, %arg8: memref<64x1xf32, #tpu.memory_space<vmem>>, %arg9: memref<1x1xf32, #tpu.memory_space<vmem>>, %arg10: memref<16x1xf32, #tpu.memory_space<vmem>>) attributes {dimension_semantics = [#tpu.dimension_semantics<parallel>], iteration_bounds = array<i64: 1>, scalar_prefetch = 0 : i64, scratch_operands = 0 : i64, tpu.core_type = #tpu.core_type<tc>, window_params = [{transform_indices = @transform_0, window_bounds = array<i64: 16, 32>}, {transform_indices = @transform_1, window_bounds = array<i64: 16, 32>}, {pipeline_mode = #tpu.pipeline_mode<synchronous>, transform_indices = @transform_2, window_bounds = array<i64: 32, 64>}, {pipeline_mode = #tpu.pipeline_mode<synchronous>, transform_indices = @transform_3, window_bounds = array<i64: 32, 64>}, {pipeline_mode = #tpu.pipeline_mode<synchronous>, transform_indices = @transform_4, window_bounds = array<i64: 1, 64>}, {pipeline_mode = #tpu.pipeline_mode<synchronous>, transform_indices = @transform_5, window_bounds = array<i64: 64, 64>}, {pipeline_mode = #tpu.pipeline_mode<synchronous>, transform_indices = @transform_6, window_bounds = array<i64: 1, 64>}, {pipeline_mode = #tpu.pipeline_mode<synchronous>, transform_indices = @transform_7, window_bounds = array<i64: 64, 1>}, {pipeline_mode = #tpu.pipeline_mode<synchronous>, transform_indices = @transform_8, window_bounds = array<i64: 1, 1>}, {transform_indices = @transform_9, window_bounds = array<i64: 16, 1>}]} {
    %c0 = arith.constant 0 : index
    %c0_0 = arith.constant 0 : index
    %0 = vector.load %arg1[%c0, %c0_0] : memref<16x32xf32, #tpu.memory_space<vmem>>, vector<16x32xf32>
    %c0_1 = arith.constant 0 : index
    %c0_2 = arith.constant 0 : index
    %1 = vector.load %arg3[%c0_1, %c0_2] : memref<32x64xf32, #tpu.memory_space<vmem>>, vector<32x64xf32>
    %cst = arith.constant dense<0.000000e+00> : vector<16x64xf32>
    %2 = tpu.matmul %0, %1, %cst {dimension_numbers = #tpu.dot_dimension_numbers<[1], [0], [0], [1], [0, 0, 1, 1], [], []>} : vector<16x32xf32>, vector<32x64xf32>, vector<16x64xf32> -> vector<16x64xf32>
    %c0_3 = arith.constant 0 : index
    %c0_4 = arith.constant 0 : index
    %3 = vector.load %arg2[%c0_3, %c0_4] : memref<16x32xf32, #tpu.memory_space<vmem>>, vector<16x32xf32>
    %c0_5 = arith.constant 0 : index
    %c0_6 = arith.constant 0 : index
    %4 = vector.load %arg4[%c0_5, %c0_6] : memref<32x64xf32, #tpu.memory_space<vmem>>, vector<32x64xf32>
    %cst_7 = arith.constant dense<0.000000e+00> : vector<16x64xf32>
    %5 = tpu.matmul %3, %4, %cst_7 {dimension_numbers = #tpu.dot_dimension_numbers<[1], [0], [0], [1], [0, 0, 1, 1], [], []>} : vector<16x32xf32>, vector<32x64xf32>, vector<16x64xf32> -> vector<16x64xf32>
    %6 = arith.addf %2, %5 : vector<16x64xf32>
    %c0_8 = arith.constant 0 : index
    %c0_9 = arith.constant 0 : index
    %7 = vector.load %arg5[%c0_8, %c0_9] : memref<1x64xf32, #tpu.memory_space<vmem>>, vector<1x64xf32>
    %8 = vector.broadcast %7 : vector<1x64xf32> to vector<16x64xf32>
    %9 = arith.addf %6, %8 : vector<16x64xf32>
    %cst_10 = arith.constant 0.000000e+00 : f32
    %10 = vector.broadcast %cst_10 : f32 to vector<16x64xf32>
    %11 = arith.maximumf %9, %10 : vector<16x64xf32>
    %c0_11 = arith.constant 0 : index
    %c0_12 = arith.constant 0 : index
    %12 = vector.load %arg6[%c0_11, %c0_12] : memref<64x64xf32, #tpu.memory_space<vmem>>, vector<64x64xf32>
    %cst_13 = arith.constant dense<0.000000e+00> : vector<16x64xf32>
    %13 = tpu.matmul %11, %12, %cst_13 {dimension_numbers = #tpu.dot_dimension_numbers<[1], [0], [0], [1], [0, 0, 1, 1], [], []>} : vector<16x64xf32>, vector<64x64xf32>, vector<16x64xf32> -> vector<16x64xf32>
    %c0_14 = arith.constant 0 : index
    %c0_15 = arith.constant 0 : index
    %14 = vector.load %arg7[%c0_14, %c0_15] : memref<1x64xf32, #tpu.memory_space<vmem>>, vector<1x64xf32>
    %15 = vector.broadcast %14 : vector<1x64xf32> to vector<16x64xf32>
    %16 = arith.addf %13, %15 : vector<16x64xf32>
    %cst_16 = arith.constant 0.000000e+00 : f32
    %17 = vector.broadcast %cst_16 : f32 to vector<16x64xf32>
    %18 = arith.maximumf %16, %17 : vector<16x64xf32>
    %c0_17 = arith.constant 0 : index
    %c0_18 = arith.constant 0 : index
    %19 = vector.load %arg8[%c0_17, %c0_18] : memref<64x1xf32, #tpu.memory_space<vmem>>, vector<64x1xf32>
    %cst_19 = arith.constant dense<0.000000e+00> : vector<16x1xf32>
    %20 = tpu.matmul %18, %19, %cst_19 {dimension_numbers = #tpu.dot_dimension_numbers<[1], [0], [0], [1], [0, 0, 1, 1], [], []>} : vector<16x64xf32>, vector<64x1xf32>, vector<16x1xf32> -> vector<16x1xf32>
    %c0_20 = arith.constant 0 : index
    %c0_21 = arith.constant 0 : index
    %21 = vector.load %arg9[%c0_20, %c0_21] : memref<1x1xf32, #tpu.memory_space<vmem>>, vector<1x1xf32>
    %22 = vector.broadcast %21 : vector<1x1xf32> to vector<16x1xf32>
    %23 = arith.addf %20, %22 : vector<16x1xf32>
    %c0_22 = arith.constant 0 : index
    %c0_23 = arith.constant 0 : index
    %24 = vector.load %arg10[%c0_22, %c0_23] : memref<16x1xf32, #tpu.memory_space<vmem>>, vector<16x1xf32>
    tpu.vector_store %arg10[%c0_22, %c0_23], %23 {strides = array<i32>} : memref<16x1xf32, #tpu.memory_space<vmem>>, vector<16x1xf32>,
    return
  }
  func.func @transform_0(%arg0: i32) -> (i32, i32) {
    %c0_i32 = arith.constant 0 : i32
    %c0_i32_0 = arith.constant 0 : i32
    return %arg0, %c0_i32 : i32, i32
  }
  func.func @transform_1(%arg0: i32) -> (i32, i32) {
    %c0_i32 = arith.constant 0 : i32
    %c0_i32_0 = arith.constant 0 : i32
    return %arg0, %c0_i32 : i32, i32
  }
  func.func @transform_2(%arg0: i32) -> (i32, i32) {
    %c0_i32 = arith.constant 0 : i32
    %c0_i32_0 = arith.constant 0 : i32
    %c0_i32_1 = arith.constant 0 : i32
    return %c0_i32, %c0_i32_0 : i32, i32
  }
  func.func @transform_3(%arg0: i32) -> (i32, i32) {
    %c0_i32 = arith.constant 0 : i32
    %c0_i32_0 = arith.constant 0 : i32
    %c0_i32_1 = arith.constant 0 : i32
    return %c0_i32, %c0_i32_0 : i32, i32
  }
  func.func @transform_4(%arg0: i32) -> (i32, i32) {
    %c0_i32 = arith.constant 0 : i32
    %c0_i32_0 = arith.constant 0 : i32
    %c0_i32_1 = arith.constant 0 : i32
    return %c0_i32, %c0_i32_0 : i32, i32
  }
  func.func @transform_5(%arg0: i32) -> (i32, i32) {
    %c0_i32 = arith.constant 0 : i32
    %c0_i32_0 = arith.constant 0 : i32
    %c0_i32_1 = arith.constant 0 : i32
    return %c0_i32, %c0_i32_0 : i32, i32
  }
  func.func @transform_6(%arg0: i32) -> (i32, i32) {
    %c0_i32 = arith.constant 0 : i32
    %c0_i32_0 = arith.constant 0 : i32
    %c0_i32_1 = arith.constant 0 : i32
    return %c0_i32, %c0_i32_0 : i32, i32
  }
  func.func @transform_7(%arg0: i32) -> (i32, i32) {
    %c0_i32 = arith.constant 0 : i32
    %c0_i32_0 = arith.constant 0 : i32
    %c0_i32_1 = arith.constant 0 : i32
    return %c0_i32, %c0_i32_0 : i32, i32
  }
  func.func @transform_8(%arg0: i32) -> (i32, i32) {
    %c0_i32 = arith.constant 0 : i32
    %c0_i32_0 = arith.constant 0 : i32
    %c0_i32_1 = arith.constant 0 : i32
    return %c0_i32, %c0_i32_0 : i32, i32
  }
  func.func @transform_9(%arg0: i32) -> (i32, i32) {
    %c0_i32 = arith.constant 0 : i32
    %c0_i32_0 = arith.constant 0 : i32
    return %arg0, %c0_i32 : i32, i32
  }
}

</mosaic_0001>

<llo_original>
// kernel: tpu_custom_call.1
$region0: #{tpu_custom_call.1}
  #allocation0 [shape = 'u32[]', space=smem, size = 0x4, offset = 0x4, fixed_abs, tag = 'smem constant byte address 0x4 - core index']
  #allocation1 [shape = 'u32[144,128]{1,0:T(1,128)}', space=vmem, size = 0x12000, scoped, tag = 'internal scratch']
  #allocation2 [shape = 'f32[1,1]{1,0:T(1,128)S(1)}', space=vmem, size = 0x200, scoped, tag = 'scoped memory for tpu_custom_call.1']
  %s0 = inlined_call_operand.vmem [shape: f32[16,32], index: 0, kind: input, shape index: {}]
  %s1 = inlined_call_operand.hbm [shape: f32[16,32], index: 1, kind: input, shape index: {}]
  %s2 = inlined_call_operand.hbm [shape: f32[32,64], index: 2, kind: input, shape index: {}]
  %s3 = inlined_call_operand.hbm [shape: f32[32,64], index: 3, kind: input, shape index: {}]
  %s4 = inlined_call_operand.vmem [shape: f32[1,64], index: 4, kind: input, shape index: {}]
  %s5 = inlined_call_operand.vmem [shape: f32[64,64], index: 5, kind: input, shape index: {}]
  %s6 = inlined_call_operand.vmem [shape: f32[1,64], index: 6, kind: input, shape index: {}]
  %s7 = inlined_call_operand.vmem [shape: f32[64,1], index: 7, kind: input, shape index: {}]
  %s8 = inlined_call_operand.<no memory space> [shape: f32[1,1], index: 8, kind: input, shape index: {}]
  %s9 = inlined_call_operand.vmem [shape: f32[16,1], index: 9, kind: output, shape index: {}]
  %s10 = sld [smem:[#allocation0]]
  $region58: #{tpu_custom_call.1} parent=0
    _
  %s12 = ssub.s32 1, %s10
  %s13 = scalar_select 0, %s12, %s10
  %v14 = vstv %s8
  %15 = vst [vmem:[#allocation2] sm:$0x1] %v14
  $region1: #{tpu_custom_call.1} parent=0
    #allocation3 [shape = 'u8[8192]{0}', space=vmem, size = 0x2000, scoped, tag = 'input window, operand 1, single buffered']
    #allocation4 [shape = 's32[1]{0}', space=sflag, size = 0x4, scoped, tag = 'scoped memory for tpu_custom_call.1']
    #allocation5 [shape = 'u8[16384]{0}', space=vmem, size = 0x4000, scoped, tag = 'input window, operand 2, single buffered']
    #allocation6 [shape = 's32[1]{0}', space=sflag, size = 0x4, scoped, tag = 'scoped memory for tpu_custom_call.1']
    #allocation7 [shape = 'u8[16384]{0}', space=vmem, size = 0x4000, scoped, tag = 'input window, operand 3, single buffered']
    %16 = vsyncpa [#allocation4], 0
    %17 = vsyncpa [#allocation6], 0
    // Predicated region
    $region2: #{tpu_custom_call.1} parent=1 // pred_check
      _
    $region3: #{tpu_custom_call.1} parent=1 // pred_check_branch
      %19 = sbr.rel (0) target = $region5
    $region4: #{tpu_custom_call.1} parent=1 // pred_region
      _
    $region5: #{tpu_custom_call.1} parent=1 // pred_fallthru
      _
    // Predicated region
    $region6: #{tpu_custom_call.1} parent=1 // pred_check
      _
    $region7: #{tpu_custom_call.1} parent=1 // pred_check_branch
      %21 = sbr.rel (0) target = $region9
    $region8: #{tpu_custom_call.1} parent=1 // pred_region
      %s23 = ssub.s32 256, 256
      %24 = vsyncadd [#allocation4], %s23
      %s25 = sshll.u32 [#allocation3], 4
      %s26 = int_to_ptr.vmem [resolvable:$true] %s25
      %31 = dma.hbm_to_vmem [thread:$0]  %s1, 256, %s26, [#allocation4], 128, 128, 8
    $region9: #{tpu_custom_call.1} parent=1 // pred_fallthru
      _
    // Predicated region
    $region10: #{tpu_custom_call.1} parent=1 // pred_check
      _
    $region11: #{tpu_custom_call.1} parent=1 // pred_check_branch
      %33 = sbr.rel (0) target = $region13
    $region12: #{tpu_custom_call.1} parent=1 // pred_region
      %s35 = ssub.s32 512, 512
      %36 = vsyncadd [#allocation6], %s35
      %s37 = sshll.u32 [#allocation5], 4
      %s38 = int_to_ptr.vmem [resolvable:$true] %s37
      %43 = dma.hbm_to_vmem [thread:$0]  %s2, 512, %s38, [#allocation6], 128, 128, 8
    $region13: #{tpu_custom_call.1} parent=1 // pred_fallthru
      _
    // Predicated region
    $region14: #{tpu_custom_call.1} parent=1 // pred_check
      _
    $region15: #{tpu_custom_call.1} parent=1 // pred_check_branch
      %45 = sbr.rel (0) target = $region17
    $region16: #{tpu_custom_call.1} parent=1 // pred_region
      %s47 = ssub.s32 512, 512
      %48 = vsyncadd [#allocation6], %s47
      %s49 = sshll.u32 [#allocation7], 4
      %s50 = int_to_ptr.vmem [resolvable:$true] %s49
      %55 = dma.hbm_to_vmem [thread:$0]  %s3, 512, %s50, [#allocation6], 128, 128, 8
    $region17: #{tpu_custom_call.1} parent=1 // pred_fallthru
      _
    // Predicated region
    $region18: #{tpu_custom_call.1} parent=1 // pred_check
      _
    $region19: #{tpu_custom_call.1} parent=1 // pred_check_branch
      %57 = sbr.rel (0) target = $region21
    $region20: #{tpu_custom_call.1} parent=1 // pred_region
      _
    $region21: #{tpu_custom_call.1} parent=1 // pred_fallthru
      _
    // Predicated region
    $region22: #{tpu_custom_call.1} parent=1 // pred_check
      _
    $region23: #{tpu_custom_call.1} parent=1 // pred_check_branch
      %59 = sbr.rel (0) target = $region25
    $region24: #{tpu_custom_call.1} parent=1 // pred_region
      _
    $region25: #{tpu_custom_call.1} parent=1 // pred_fallthru
      _
    // Predicated region
    $region26: #{tpu_custom_call.1} parent=1 // pred_check
      _
    $region27: #{tpu_custom_call.1} parent=1 // pred_check_branch
      %61 = sbr.rel (0) target = $region29
    $region28: #{tpu_custom_call.1} parent=1 // pred_region
      _
    $region29: #{tpu_custom_call.1} parent=1 // pred_fallthru
      _
    // Predicated region
    $region30: #{tpu_custom_call.1} parent=1 // pred_check
      _
    $region31: #{tpu_custom_call.1} parent=1 // pred_check_branch
      %63 = sbr.rel (0) target = $region33
    $region32: #{tpu_custom_call.1} parent=1 // pred_region
      _
    $region33: #{tpu_custom_call.1} parent=1 // pred_fallthru
      _
    // Predicated region
    $region34: #{tpu_custom_call.1} parent=1 // pred_check
      _
    $region35: #{tpu_custom_call.1} parent=1 // pred_check_branch
      %65 = sbr.rel (0) target = $region37
    $region36: #{tpu_custom_call.1} parent=1 // pred_region
      _
    $region37: #{tpu_custom_call.1} parent=1 // pred_fallthru
      _
    // Predicated region
    $region38: #{tpu_custom_call.1} parent=1 // pred_check
      _
    $region39: #{tpu_custom_call.1} parent=1 // pred_check_branch
      %67 = sbr.rel (0) target = $region41
    $region40: #{tpu_custom_call.1} parent=1 // pred_region
      %68 = dma.done [#allocation4], 256
    $region41: #{tpu_custom_call.1} parent=1 // pred_fallthru
      _
    // Predicated region
    $region42: #{tpu_custom_call.1} parent=1 // pred_check
      _
    $region43: #{tpu_custom_call.1} parent=1 // pred_check_branch
      %70 = sbr.rel (0) target = $region45
    $region44: #{tpu_custom_call.1} parent=1 // pred_region
      %71 = dma.done [#allocation6], 512
    $region45: #{tpu_custom_call.1} parent=1 // pred_fallthru
      _
    // Predicated region
    $region46: #{tpu_custom_call.1} parent=1 // pred_check
      _
    $region47: #{tpu_custom_call.1} parent=1 // pred_check_branch
      %73 = sbr.rel (0) target = $region49
    $region48: #{tpu_custom_call.1} parent=1 // pred_region
      %74 = dma.done [#allocation6], 512
    $region49: #{tpu_custom_call.1} parent=1 // pred_fallthru
      _
    %v75 = vld [vmem:[%s0] sm:$0xff]
    %v76 = vld [vmem:[%s0 + $0x8] sm:$0xff]
    %v77 = vld [vmem:[#allocation5] sm:$0xff]
    %v78 = vld [vmem:[#allocation5 + $0x8] sm:$0xff]
    %v79 = vld [vmem:[#allocation5 + $0x10] sm:$0xff]
    %v80 = vld [vmem:[#allocation5 + $0x18] sm:$0xff]
    %v81 = vld [vmem:[#allocation3] sm:$0xff]
    %v82 = vld [vmem:[#allocation3 + $0x8] sm:$0xff]
    %v83 = vld [vmem:[#allocation7] sm:$0xff]
    %v84 = vld [vmem:[#allocation7 + $0x8] sm:$0xff]
    %v85 = vld [vmem:[#allocation7 + $0x10] sm:$0xff]
    %v86 = vld [vmem:[#allocation7 + $0x18] sm:$0xff]
    %vm87 = vcmask 261120
    %v89 = vsel %vm87, %v81, 0
    %v92 = vsel %vm87, %v82, 0
    %94 = vmatprep.subr.mxu0 0.0
    %95 = vmatpush1.msra.mxu0 %v83
    %96 = vmatprep.subr.mxu0 0.0
    %97 = vmatpush1.msra.mxu0 %v84
    %98 = vmatprep.subr.mxu0 0.0
    %99 = vmatpush1.msra.mxu0 %v85
    %100 = vmatprep.subr.mxu0 0.0
    %101 = vmatpush1.msra.mxu0 %v86
    %102 = vmatprep.subr.mxu0 0.0
    %103 = vmatpush1.msra.mxu0 0.0
    %104 = vmatprep.subr.mxu0 0.0
    %105 = vmatpush1.msra.mxu0 0.0
    %106 = vmatprep.subr.mxu0 0.0
    %107 = vmatpush1.msra.mxu0 0.0
    %108 = vmatprep.subr.mxu0 0.0
    %109 = vmatpush1.msra.mxu0 0.0
    %110 = vmatprep.subr.mxu0 0.0
    %111 = vmatpush1.msra.mxu0 0.0
    %112 = vmatprep.subr.mxu0 0.0
    %113 = vmatpush1.msra.mxu0 0.0
    %114 = vmatprep.subr.mxu0 0.0
    %115 = vmatpush1.msra.mxu0 0.0
    %116 = vmatprep.subr.mxu0 0.0
    %117 = vmatpush1.msra.mxu0 0.0
    %118 = vmatprep.subr.mxu0 0.0
    %119 = vmatpush1.msra.mxu0 0.0
    %120 = vmatprep.subr.mxu0 0.0
    %121 = vmatpush1.msra.mxu0 0.0
    %122 = vmatprep.subr.mxu0 0.0
    %123 = vmatpush1.msra.mxu0 0.0
    %124 = vmatprep.subr.mxu0 0.0
    %125 = vmatpush1.msra.mxu0 0.0
    %126 = vmatprep.subr.mxu0 0.0
    %127 = vmatpush1.msra.mxu0 0.0
    %128 = vmatprep.subr.mxu0 0.0
    %129 = vmatpush1.msra.mxu0 0.0
    %130 = vmatprep.subr.mxu0 0.0
    %131 = vmatpush1.msra.mxu0 0.0
    %132 = vmatprep.subr.mxu0 0.0
    %133 = vmatpush1.msra.mxu0 0.0
    %134 = vmatprep.subr.mxu0 0.0
    %135 = vmatpush1.msra.mxu0 0.0
    %136 = vmatprep.subr.mxu0 0.0
    %137 = vmatpush1.msra.mxu0 0.0
    %138 = vmatprep.subr.mxu0 0.0
    %139 = vmatpush1.msra.mxu0 0.0
    %140 = vmatprep.subr.mxu0 0.0
    %141 = vmatpush1.msra.mxu0 0.0
    %142 = vmatprep.subr.mxu0 0.0
    %143 = vmatpush1.msra.mxu0 0.0
    %144 = vmatprep.subr.mxu0 0.0
    %145 = vmatpush1.msra.mxu0 0.0
    %146 = vmatprep.subr.mxu0 0.0
    %147 = vmatpush1.msra.mxu0 0.0
    %148 = vmatprep.subr.mxu0 0.0
    %149 = vmatpush1.msra.mxu0 0.0
    %150 = vmatprep.subr.mxu0 0.0
    %151 = vmatpush1.msra.mxu0 0.0
    %152 = vmatprep.subr.mxu0 0.0
    %153 = vmatpush1.msra.mxu0 0.0
    %154 = vmatprep.subr.mxu0 0.0
    %155 = vmatpush1.msra.mxu0 0.0
    %156 = vmatprep.subr.mxu0 0.0
    %157 = vmatpush1.msra.mxu0 0.0
    %158 = vmatprep.mubr.f32.mxu0 0.0
    %159 = vmatmul.mubr.f32.gmra.mrb[0].mxu0 %v89
    %v160 = vpop.f32.mrb[0].mxu0
    %v161 = vadd.f32 0.0, %v160
    %v162 = vpop.f32.mrb[0].mxu0
    %163 = vmatprep.mubr.f32.mxu0 0.0
    %164 = vmatmul.mubr.f32.gmra.mrb[0].mxu0 %v92
    %v165 = vpop.f32.mrb[0].mxu0
    %v166 = vadd.f32 0.0, %v165
    %v167 = vpop.f32.mrb[0].mxu0
    %168 = vdwg.mxu0
    %v170 = vsel %vm87, %v75, 0
    %v173 = vsel %vm87, %v76, 0
    %175 = vmatprep.subr.mxu0 0.0
    %176 = vmatpush1.msra.mxu0 %v77
    %177 = vmatprep.subr.mxu0 0.0
    %178 = vmatpush1.msra.mxu0 %v78
    %179 = vmatprep.subr.mxu0 0.0
    %180 = vmatpush1.msra.mxu0 %v79
    %181 = vmatprep.subr.mxu0 0.0
    %182 = vmatpush1.msra.mxu0 %v80
    %183 = vmatprep.subr.mxu0 0.0
    %184 = vmatpush1.msra.mxu0 0.0
    %185 = vmatprep.subr.mxu0 0.0
    %186 = vmatpush1.msra.mxu0 0.0
    %187 = vmatprep.subr.mxu0 0.0
    %188 = vmatpush1.msra.mxu0 0.0
    %189 = vmatprep.subr.mxu0 0.0
    %190 = vmatpush1.msra.mxu0 0.0
    %191 = vmatprep.subr.mxu0 0.0
    %192 = vmatpush1.msra.mxu0 0.0
    %193 = vmatprep.subr.mxu0 0.0
    %194 = vmatpush1.msra.mxu0 0.0
    %195 = vmatprep.subr.mxu0 0.0
    %196 = vmatpush1.msra.mxu0 0.0
    %197 = vmatprep.subr.mxu0 0.0
    %198 = vmatpush1.msra.mxu0 0.0
    %199 = vmatprep.subr.mxu0 0.0
    %200 = vmatpush1.msra.mxu0 0.0
    %201 = vmatprep.subr.mxu0 0.0
    %202 = vmatpush1.msra.mxu0 0.0
    %203 = vmatprep.subr.mxu0 0.0
    %204 = vmatpush1.msra.mxu0 0.0
    %205 = vmatprep.subr.mxu0 0.0
    %206 = vmatpush1.msra.mxu0 0.0
    %207 = vmatprep.subr.mxu0 0.0
    %208 = vmatpush1.msra.mxu0 0.0
    %209 = vmatprep.subr.mxu0 0.0
    %210 = vmatpush1.msra.mxu0 0.0
    %211 = vmatprep.subr.mxu0 0.0
    %212 = vmatpush1.msra.mxu0 0.0
    %213 = vmatprep.subr.mxu0 0.0
    %214 = vmatpush1.msra.mxu0 0.0
    %215 = vmatprep.subr.mxu0 0.0
    %216 = vmatpush1.msra.mxu0 0.0
    %217 = vmatprep.subr.mxu0 0.0
    %218 = vmatpush1.msra.mxu0 0.0
    %219 = vmatprep.subr.mxu0 0.0
    %220 = vmatpush1.msra.mxu0 0.0
    %221 = vmatprep.subr.mxu0 0.0
    %222 = vmatpush1.msra.mxu0 0.0
    %223 = vmatprep.subr.mxu0 0.0
    %224 = vmatpush1.msra.mxu0 0.0
    %225 = vmatprep.subr.mxu0 0.0
    %226 = vmatpush1.msra.mxu0 0.0
    %227 = vmatprep.subr.mxu0 0.0
    %228 = vmatpush1.msra.mxu0 0.0
    %229 = vmatprep.subr.mxu0 0.0
    %230 = vmatpush1.msra.mxu0 0.0
    %231 = vmatprep.subr.mxu0 0.0
    %232 = vmatpush1.msra.mxu0 0.0
    %233 = vmatprep.subr.mxu0 0.0
    %234 = vmatpush1.msra.mxu0 0.0
    %235 = vmatprep.subr.mxu0 0.0
    %236 = vmatpush1.msra.mxu0 0.0
    %237 = vmatprep.subr.mxu0 0.0
    %238 = vmatpush1.msra.mxu0 0.0
    %239 = vmatprep.mubr.f32.mxu0 0.0
    %240 = vmatmul.mubr.f32.gmra.mrb[0].mxu0 %v170
    %v241 = vpop.f32.mrb[0].mxu0
    %v242 = vadd.f32 %v161, %v241
    %v243 = vpop.f32.mrb[0].mxu0
    %244 = vmatprep.mubr.f32.mxu0 0.0
    %245 = vmatmul.mubr.f32.gmra.mrb[0].mxu0 %v173
    %v246 = vpop.f32.mrb[0].mxu0
    %v247 = vadd.f32 %v166, %v246
    %v248 = vpop.f32.mrb[0].mxu0
    %249 = vdwg.mxu0
    %v250 = vld [vmem:[%s4] sm:$0x1]
    %v252 = vlaneseq
    %v253 = vshrl.u32 %v252, 7
    %v254 = vsub.s32 0, %v253
    %v255 = vrot.slane %v250, %v254
    %v257 = vadd.f32 %v242, %v255
    %v258 = vadd.f32 %v247, %v255
    %v259 = vmax.f32 %v257, 0.0
    %v260 = vmax.f32 %v258, 0.0
    %v261 = vld [vmem:[%s5] sm:$0xff]
    %v262 = vld [vmem:[%s5 + $0x8] sm:$0xff]
    %v263 = vld [vmem:[%s5 + $0x10] sm:$0xff]
    %v264 = vld [vmem:[%s5 + $0x18] sm:$0xff]
    %v265 = vld [vmem:[%s5 + $0x20] sm:$0xff]
    %v266 = vld [vmem:[%s5 + $0x28] sm:$0xff]
    %v267 = vld [vmem:[%s5 + $0x30] sm:$0xff]
    %v268 = vld [vmem:[%s5 + $0x38] sm:$0xff]
    %v269 = vld [vmem:[%s6] sm:$0x1]
    %v271 = vlaneseq
    %v272 = vshrl.u32 %v271, 7
    %v273 = vsub.s32 0, %v272
    %v274 = vrot.slane %v269, %v273
    %vm276 = vcmask 523264
    %v278 = vsel %vm276, %v259, 0
    %v281 = vsel %vm276, %v260, 0
    %283 = vmatprep.subr.mxu0 0.0
    %284 = vmatpush1.msra.mxu0 %v261
    %285 = vmatprep.subr.mxu0 0.0
    %286 = vmatpush1.msra.mxu0 %v262
    %287 = vmatprep.subr.mxu0 0.0
    %288 = vmatpush1.msra.mxu0 %v263
    %289 = vmatprep.subr.mxu0 0.0
    %290 = vmatpush1.msra.mxu0 %v264
    %291 = vmatprep.subr.mxu0 0.0
    %292 = vmatpush1.msra.mxu0 %v265
    %293 = vmatprep.subr.mxu0 0.0
    %294 = vmatpush1.msra.mxu0 %v266
    %295 = vmatprep.subr.mxu0 0.0
    %296 = vmatpush1.msra.mxu0 %v267
    %297 = vmatprep.subr.mxu0 0.0
    %298 = vmatpush1.msra.mxu0 %v268
    %299 = vmatprep.subr.mxu0 0.0
    %300 = vmatpush1.msra.mxu0 0.0
    %301 = vmatprep.subr.mxu0 0.0
    %302 = vmatpush1.msra.mxu0 0.0
    %303 = vmatprep.subr.mxu0 0.0
    %304 = vmatpush1.msra.mxu0 0.0
    %305 = vmatprep.subr.mxu0 0.0
    %306 = vmatpush1.msra.mxu0 0.0
    %307 = vmatprep.subr.mxu0 0.0
    %308 = vmatpush1.msra.mxu0 0.0
    %309 = vmatprep.subr.mxu0 0.0
    %310 = vmatpush1.msra.mxu0 0.0
    %311 = vmatprep.subr.mxu0 0.0
    %312 = vmatpush1.msra.mxu0 0.0
    %313 = vmatprep.subr.mxu0 0.0
    %314 = vmatpush1.msra.mxu0 0.0
    %315 = vmatprep.subr.mxu0 0.0
    %316 = vmatpush1.msra.mxu0 0.0
    %317 = vmatprep.subr.mxu0 0.0
    %318 = vmatpush1.msra.mxu0 0.0
    %319 = vmatprep.subr.mxu0 0.0
    %320 = vmatpush1.msra.mxu0 0.0
    %321 = vmatprep.subr.mxu0 0.0
    %322 = vmatpush1.msra.mxu0 0.0
    %323 = vmatprep.subr.mxu0 0.0
    %324 = vmatpush1.msra.mxu0 0.0
    %325 = vmatprep.subr.mxu0 0.0
    %326 = vmatpush1.msra.mxu0 0.0
    %327 = vmatprep.subr.mxu0 0.0
    %328 = vmatpush1.msra.mxu0 0.0
    %329 = vmatprep.subr.mxu0 0.0
    %330 = vmatpush1.msra.mxu0 0.0
    %331 = vmatprep.subr.mxu0 0.0
    %332 = vmatpush1.msra.mxu0 0.0
    %333 = vmatprep.subr.mxu0 0.0
    %334 = vmatpush1.msra.mxu0 0.0
    %335 = vmatprep.subr.mxu0 0.0
    %336 = vmatpush1.msra.mxu0 0.0
    %337 = vmatprep.subr.mxu0 0.0
    %338 = vmatpush1.msra.mxu0 0.0
    %339 = vmatprep.subr.mxu0 0.0
    %340 = vmatpush1.msra.mxu0 0.0
    %341 = vmatprep.subr.mxu0 0.0
    %342 = vmatpush1.msra.mxu0 0.0
    %343 = vmatprep.subr.mxu0 0.0
    %344 = vmatpush1.msra.mxu0 0.0
    %345 = vmatprep.subr.mxu0 0.0
    %346 = vmatpush1.msra.mxu0 0.0
    %347 = vmatprep.mubr.f32.mxu0 0.0
    %348 = vmatmul.mubr.f32.gmra.mrb[0].mxu0 %v278
    %v349 = vpop.f32.mrb[0].mxu0
    %v350 = vadd.f32 %v274, %v349
    %v351 = vpop.f32.mrb[0].mxu0
    %352 = vmatprep.mubr.f32.mxu0 0.0
    %353 = vmatmul.mubr.f32.gmra.mrb[0].mxu0 %v281
    %v354 = vpop.f32.mrb[0].mxu0
    %v355 = vadd.f32 %v274, %v354
    %v356 = vpop.f32.mrb[0].mxu0
    %357 = vdwg.mxu0
    %v358 = vmax.f32 %v350, 0.0
    %v359 = vmax.f32 %v355, 0.0
    %v360 = vld [vmem:[%s7] sm:$0xff]
    %v361 = vld [vmem:[%s7 + $0x8] sm:$0xff]
    %v362 = vld [vmem:[%s7 + $0x10] sm:$0xff]
    %v363 = vld [vmem:[%s7 + $0x18] sm:$0xff]
    %v364 = vld [vmem:[%s7 + $0x20] sm:$0xff]
    %v365 = vld [vmem:[%s7 + $0x28] sm:$0xff]
    %v366 = vld [vmem:[%s7 + $0x30] sm:$0xff]
    %v367 = vld [vmem:[%s7 + $0x38] sm:$0xff]
    %v368 = vld [vmem:[#allocation2] sm:$0x1]
    %v370 = vlaneseq
    %v371 = vshrl.u32 %v370, 7
    %v372 = vsub.s32 0, %v371
    %v373 = vrot.slane %v368, %v372
    %v376 = vsel %vm276, %v358, 0
    %v379 = vsel %vm276, %v359, 0
    %381 = vmatprep.subr.mxu0 0.0
    %382 = vmatpush1.msra.mxu0 %v360
    %383 = vmatprep.subr.mxu0 0.0
    %384 = vmatpush1.msra.mxu0 %v361
    %385 = vmatprep.subr.mxu0 0.0
    %386 = vmatpush1.msra.mxu0 %v362
    %387 = vmatprep.subr.mxu0 0.0
    %388 = vmatpush1.msra.mxu0 %v363
    %389 = vmatprep.subr.mxu0 0.0
    %390 = vmatpush1.msra.mxu0 %v364
    %391 = vmatprep.subr.mxu0 0.0
    %392 = vmatpush1.msra.mxu0 %v365
    %393 = vmatprep.subr.mxu0 0.0
    %394 = vmatpush1.msra.mxu0 %v366
    %395 = vmatprep.subr.mxu0 0.0
    %396 = vmatpush1.msra.mxu0 %v367
    %397 = vmatprep.subr.mxu0 0.0
    %398 = vmatpush1.msra.mxu0 0.0
    %399 = vmatprep.subr.mxu0 0.0
    %400 = vmatpush1.msra.mxu0 0.0
    %401 = vmatprep.subr.mxu0 0.0
    %402 = vmatpush1.msra.mxu0 0.0
    %403 = vmatprep.subr.mxu0 0.0
    %404 = vmatpush1.msra.mxu0 0.0
    %405 = vmatprep.subr.mxu0 0.0
    %406 = vmatpush1.msra.mxu0 0.0
    %407 = vmatprep.subr.mxu0 0.0
    %408 = vmatpush1.msra.mxu0 0.0
    %409 = vmatprep.subr.mxu0 0.0
    %410 = vmatpush1.msra.mxu0 0.0
    %411 = vmatprep.subr.mxu0 0.0
    %412 = vmatpush1.msra.mxu0 0.0
    %413 = vmatprep.subr.mxu0 0.0
    %414 = vmatpush1.msra.mxu0 0.0
    %415 = vmatprep.subr.mxu0 0.0
    %416 = vmatpush1.msra.mxu0 0.0
    %417 = vmatprep.subr.mxu0 0.0
    %418 = vmatpush1.msra.mxu0 0.0
    %419 = vmatprep.subr.mxu0 0.0
    %420 = vmatpush1.msra.mxu0 0.0
    %421 = vmatprep.subr.mxu0 0.0
    %422 = vmatpush1.msra.mxu0 0.0
    %423 = vmatprep.subr.mxu0 0.0
    %424 = vmatpush1.msra.mxu0 0.0
    %425 = vmatprep.subr.mxu0 0.0
    %426 = vmatpush1.msra.mxu0 0.0
    %427 = vmatprep.subr.mxu0 0.0
    %428 = vmatpush1.msra.mxu0 0.0
    %429 = vmatprep.subr.mxu0 0.0
    %430 = vmatpush1.msra.mxu0 0.0
    %431 = vmatprep.subr.mxu0 0.0
    %432 = vmatpush1.msra.mxu0 0.0
    %433 = vmatprep.subr.mxu0 0.0
    %434 = vmatpush1.msra.mxu0 0.0
    %435 = vmatprep.subr.mxu0 0.0
    %436 = vmatpush1.msra.mxu0 0.0
    %437 = vmatprep.subr.mxu0 0.0
    %438 = vmatpush1.msra.mxu0 0.0
    %439 = vmatprep.subr.mxu0 0.0
    %440 = vmatpush1.msra.mxu0 0.0
    %441 = vmatprep.subr.mxu0 0.0
    %442 = vmatpush1.msra.mxu0 0.0
    %443 = vmatprep.subr.mxu0 0.0
    %444 = vmatpush1.msra.mxu0 0.0
    %445 = vmatprep.mubr.f32.mxu0 0.0
    %446 = vmatmul.mubr.f32.gmra.mrb[0].mxu0 %v376
    %v447 = vpop.f32.mrb[0].mxu0
    %v448 = vadd.f32 %v373, %v447
    %v449 = vpop.f32.mrb[0].mxu0
    %450 = vmatprep.mubr.f32.mxu0 0.0
    %451 = vmatmul.mubr.f32.gmra.mrb[0].mxu0 %v379
    %v452 = vpop.f32.mrb[0].mxu0
    %v453 = vadd.f32 %v373, %v452
    %v454 = vpop.f32.mrb[0].mxu0
    %455 = vdwg.mxu0
    %vm456 = vcmask 7168
    %457 = vst.msk [vmem:[%s9] sm:$0xff] %vm456, %v448
    %458 = vst.msk [vmem:[%s9 + $0x8] sm:$0xff] %vm456, %v453
    // Predicated region
    $region50: #{tpu_custom_call.1} parent=1 // pred_check
      _
    $region51: #{tpu_custom_call.1} parent=1 // pred_check_branch
      %460 = sbr.rel (0) target = $region53
    $region52: #{tpu_custom_call.1} parent=1 // pred_region
      _
    $region53: #{tpu_custom_call.1} parent=1 // pred_fallthru
      _
    // Predicated region
    $region54: #{tpu_custom_call.1} parent=1 // pred_check
      _
    $region55: #{tpu_custom_call.1} parent=1 // pred_check_branch
      %462 = sbr.rel (0) target = $region57
    $region56: #{tpu_custom_call.1} parent=1 // pred_region
      _
    $region57: #{tpu_custom_call.1} parent=1 // pred_fallthru
      _
    %463 = vsyncpa [#allocation4], 1
    %464 = vsyncpa [#allocation6], 1

</llo_original>
